<compile_context>
chip_gen: v5e
topology: v5e:2x2
jax: 0.10.0
libtpu: 0.0.40
codegen_flags: <defaults>
</compile_context>

<pallas_src>
import numpy as np
import jax
import jax.numpy as jnp
from jax.experimental import pallas as pl
from jax.experimental.pallas import tpu as pltpu


def _round_up(x: int, m: int) -> int:
    return ((x + m - 1) // m) * m


def _fourier_hann_bases(fftsize: int, window_size: int):
    """Deterministic Fourier * Hann bases, exactly as the module __init__."""
    F = fftsize // 2 + 1
    win = np.hanning(window_size)                       # (W,)
    w_idx = np.arange(F)[:, None]                       # (F, 1)
    t_idx = np.arange(window_size)[None, :]             # (1, W)
    ang = 2.0 * np.pi * w_idx * t_idx / fftsize         # (F, W)
    wr = np.ascontiguousarray((np.cos(ang) * win).T).astype(np.float32)   # (W, F)
    wi = np.ascontiguousarray((-np.sin(ang) * win).T).astype(np.float32)  # (W, F)
    return wr, wi


def _make_fused_weight(fftsize: int, window_size: int, n_pad: int):
    """(W, Npad) weight with interleaved [r0, i0, r1, i1, ...] columns, zero padded."""
    wr, wi = _fourier_hann_bases(fftsize, window_size)
    W, F = wr.shape
    w = np.zeros((W, n_pad), dtype=np.float32)
    w[:, 0:2 * F:2] = wr
    w[:, 1:2 * F:2] = wi
    return jnp.asarray(w)


def _frames_from_signal(sig, window_size: int, stride: int, L: int):
    """(B, T) -> (B, L, W) frames.  Uses shifted slices + reshape (no gather)
    when stride divides the window size (the common STFT hop setting)."""
    B = sig.shape[0]
    W = window_size
    if W % stride == 0:
        R = W // stride
        pieces = [
            sig[:, k * stride:k * stride + L * stride].reshape(B, L, stride)
            for k in range(R)
        ]
        return jnp.concatenate(pieces, axis=-1)
    idx = jnp.arange(L)[:, None] * stride + jnp.arange(W)[None, :]
    return jnp.take(sig, idx, axis=1)


def _stft_kernel(frames_ref, w_ref, out_ref):
    # frames: (TM, W), w: (W, Npad) -> out: (TM, Npad), single fused MXU matmul.
    out_ref[...] = jnp.dot(
        frames_ref[...], w_ref[...], preferred_element_type=jnp.float32
    )


def stft_forward(x, fftsize: int, window_size: int, stride: int, tile_m: int = 1024):
    """x: (B, 1, T) float  ->  (B, L, F, 2) float32."""
    B, C, T = x.shape
    assert C == 1, "STFT expects a single input channel"
    F = fftsize // 2 + 1
    W = window_size
    L = (T - W) // stride + 1
    M = B * L
    n_pad = max(128, _round_up(2 * F, 128))          # lane-dense output width

    w_fused = _make_fused_weight(fftsize, window_size, n_pad)

    frames = _frames_from_signal(x[:, 0, :].astype(jnp.float32), W, stride, L)
    frames = frames.reshape(M, W)

    # Tile the row dimension; pad M up to a multiple of the tile when gridded.
    if M <= tile_m:
        tm, mp = M, M                                 # single full-dim block
    else:
        tm = tile_m
        mp = _round_up(M, tm)
        if mp > M:
            frames = jnp.pad(frames, ((0, mp - M), (0, 0)))

    cost = pl.CostEstimate(
        flops=2 * mp * W * n_pad,
        transcendentals=0,
        bytes_accessed=4 * (mp * W + W * n_pad + mp * n_pad),
    )

    out = pl.pallas_call(
        _stft_kernel,
        out_shape=jax.ShapeDtypeStruct((mp, n_pad), jnp.float32),
        grid=(mp // tm,),
        in_specs=[
            pl.BlockSpec((tm, W), lambda i: (i, 0)),       # frames tile
            pl.BlockSpec((W, n_pad), lambda i: (0, 0)),    # weight stays resident
        ],
        out_specs=pl.BlockSpec((tm, n_pad), lambda i: (i, 0)),
        compiler_params=pltpu.CompilerParams(
            dimension_semantics=("parallel",),
        ),
        cost_estimate=cost,
    )(frames, w_fused)

    # (Mp, Npad) -> valid (M, 2F) -> (B, L, F, 2).  Interleaved weight columns
    # make torch's stack([r, i], -1).permute(0, 2, 1, 3) a free reshape here.
    return out[:M, : 2 * F].reshape(B, L, F, 2)


if __name__ == "__main__":
    fftsize = 32
    window_size = 32
    stride = 16

    B, T = 2, 144                                  # L = (144 - 32)//16 + 1 = 8
    key = jax.random.PRNGKey(0)
    x = jax.random.normal(key, (B, 1, T), dtype=jnp.float32)

    out = jax.block_until_ready(stft_forward(x, fftsize, window_size, stride))

    # Pure-JAX reference (un-fused weights, gather-based framing).
    F = fftsize // 2 + 1
    L = (T - window_size) // stride + 1
    wr_np, wi_np = _fourier_hann_bases(fftsize, window_size)
    idx = jnp.arange(L)[:, None] * stride + jnp.arange(window_size)[None, :]
    frames_ref = x[:, 0, :][:, idx]                                  # (B, L, W)
    ref_r = jnp.einsum("blw,wf->blf", frames_ref, jnp.asarray(wr_np))
    ref_i = jnp.einsum("blw,wf->blf", frames_ref, jnp.asarray(wi_np))
    ref = jnp.stack([ref_r, ref_i], axis=-1)                         # (B, L, F, 2)

    assert out.shape == (B, L, F, 2), out.shape
    assert jnp.allclose(out, ref, atol=1e-4, rtol=1e-4)
    print("KERNEL_OK")
</pallas_src>

<mosaic_0001>
module attributes {stable_mosaic.version = 11 : i64} {
  func.func @_stft_kernel(%arg0: i32, %arg1: memref<16x32xf32, #tpu.memory_space<vmem>>, %arg2: memref<32x128xf32, #tpu.memory_space<vmem>>, %arg3: memref<16x128xf32, #tpu.memory_space<vmem>>) attributes {dimension_semantics = [#tpu.dimension_semantics<parallel>], iteration_bounds = array<i64: 1>, scalar_prefetch = 0 : i64, scratch_operands = 0 : i64, tpu.core_type = #tpu.core_type<tc>, window_params = [{transform_indices = @transform_0, window_bounds = array<i64: 16, 32>}, {pipeline_mode = #tpu.pipeline_mode<synchronous>, transform_indices = @transform_1, window_bounds = array<i64: 32, 128>}, {transform_indices = @transform_2, window_bounds = array<i64: 16, 128>}]} {
    %c0 = arith.constant 0 : index
    %c0_0 = arith.constant 0 : index
    %0 = vector.load %arg1[%c0, %c0_0] : memref<16x32xf32, #tpu.memory_space<vmem>>, vector<16x32xf32>
    %c0_1 = arith.constant 0 : index
    %c0_2 = arith.constant 0 : index
    %1 = vector.load %arg2[%c0_1, %c0_2] : memref<32x128xf32, #tpu.memory_space<vmem>>, vector<32x128xf32>
    %cst = arith.constant dense<0.000000e+00> : vector<16x128xf32>
    %2 = tpu.matmul %0, %1, %cst {dimension_numbers = #tpu.dot_dimension_numbers<[1], [0], [0], [1], [0, 0, 1, 1], [], []>} : vector<16x32xf32>, vector<32x128xf32>, vector<16x128xf32> -> vector<16x128xf32>
    %c0_3 = arith.constant 0 : index
    %c0_4 = arith.constant 0 : index
    %3 = vector.load %arg3[%c0_3, %c0_4] : memref<16x128xf32, #tpu.memory_space<vmem>>, vector<16x128xf32>
    tpu.vector_store %arg3[%c0_3, %c0_4], %2 {strides = array<i32>} : memref<16x128xf32, #tpu.memory_space<vmem>>, vector<16x128xf32>,
    return
  }
  func.func @transform_0(%arg0: i32) -> (i32, i32) {
    %c0_i32 = arith.constant 0 : i32
    %c0_i32_0 = arith.constant 0 : i32
    return %arg0, %c0_i32 : i32, i32
  }
  func.func @transform_1(%arg0: i32) -> (i32, i32) {
    %c0_i32 = arith.constant 0 : i32
    %c0_i32_0 = arith.constant 0 : i32
    %c0_i32_1 = arith.constant 0 : i32
    return %c0_i32, %c0_i32_0 : i32, i32
  }
  func.func @transform_2(%arg0: i32) -> (i32, i32) {
    %c0_i32 = arith.constant 0 : i32
    %c0_i32_0 = arith.constant 0 : i32
    return %arg0, %c0_i32 : i32, i32
  }
}

</mosaic_0001>

<llo_original>
// kernel: tpu_custom_call.1
$region0: #{tpu_custom_call.1}
  #allocation0 [shape = 'u32[]', space=smem, size = 0x4, offset = 0x4, fixed_abs, tag = 'smem constant byte address 0x4 - core index']
  #allocation1 [shape = 'u32[72,128]{1,0:T(1,128)}', space=vmem, size = 0x9000, scoped, tag = 'internal scratch']
  %s0 = inlined_call_operand.hbm [shape: f32[16,32], index: 0, kind: input, shape index: {}]
  %s1 = inlined_call_operand.hbm [shape: f32[32,128], index: 1, kind: input, shape index: {}]
  %s2 = inlined_call_operand.hbm [shape: f32[16,128], index: 2, kind: output, shape index: {}]
  %s3 = sld [smem:[#allocation0]]
  $region26: #{tpu_custom_call.1} parent=0
    _
  %s5 = ssub.s32 1, %s3
  %s6 = scalar_select 0, %s5, %s3
  $region1: #{tpu_custom_call.1} parent=0
    #allocation2 [shape = 'u8[8192]{0}', space=vmem, size = 0x2000, scoped, tag = 'input window, operand 0, single buffered']
    #allocation3 [shape = 's32[1]{0}', space=sflag, size = 0x4, scoped, tag = 'scoped memory for tpu_custom_call.1']
    #allocation4 [shape = 's32[1]{0}', space=sflag, size = 0x4, scoped, tag = 'scoped memory for tpu_custom_call.1']
    #allocation5 [shape = 'u8[16384]{0}', space=vmem, size = 0x4000, scoped, tag = 'input window, operand 1, single buffered']
    #allocation6 [shape = 's32[1]{0}', space=sflag, size = 0x4, scoped, tag = 'scoped memory for tpu_custom_call.1']
    #allocation7 [shape = 'u8[8192]{0}', space=vmem, size = 0x2000, scoped, tag = 'output window, operand 0, single buffered']
    %7 = vsyncpa [#allocation3], 0
    %8 = vsyncpa [#allocation6], 0
    %9 = vsyncpa [#allocation4], 0
    // Predicated region
    $region2: #{tpu_custom_call.1} parent=1 // pred_check
      _
    $region3: #{tpu_custom_call.1} parent=1 // pred_check_branch
      %11 = sbr.rel (0) target = $region5
    $region4: #{tpu_custom_call.1} parent=1 // pred_region
      %13 = vsyncadd [#allocation3], 0
      %s14 = sshll.u32 %s0, 4
      %s15 = int_to_ptr.hbm [resolvable:$true] %s14
      %s16 = sshll.u32 [#allocation2], 4
      %s17 = int_to_ptr.vmem [resolvable:$true] %s16
      %22 = dma.hbm_to_vmem [thread:$0]  %s15, 256, %s17, [#allocation3], 128, 128, 8
    $region5: #{tpu_custom_call.1} parent=1 // pred_fallthru
      _
    // Predicated region
    $region6: #{tpu_custom_call.1} parent=1 // pred_check
      _
    $region7: #{tpu_custom_call.1} parent=1 // pred_check_branch
      %24 = sbr.rel (0) target = $region9
    $region8: #{tpu_custom_call.1} parent=1 // pred_region
      %26 = vsyncadd [#allocation6], 0
      %s27 = sshll.u32 %s1, 4
      %s28 = int_to_ptr.hbm [resolvable:$true] %s27
      %s29 = sshll.u32 [#allocation5], 4
      %s30 = int_to_ptr.vmem [resolvable:$true] %s29
      %35 = dma.hbm_to_vmem [thread:$0]  %s28, 512, %s30, [#allocation6], 128, 128, 8
    $region9: #{tpu_custom_call.1} parent=1 // pred_fallthru
      _
    // Predicated region
    $region10: #{tpu_custom_call.1} parent=1 // pred_check
      _
    $region11: #{tpu_custom_call.1} parent=1 // pred_check_branch
      %37 = sbr.rel (0) target = $region13
    $region12: #{tpu_custom_call.1} parent=1 // pred_region
      %39 = dma.done [#allocation3], 256
    $region13: #{tpu_custom_call.1} parent=1 // pred_fallthru
      _
    // Predicated region
    $region14: #{tpu_custom_call.1} parent=1 // pred_check
      _
    $region15: #{tpu_custom_call.1} parent=1 // pred_check_branch
      %41 = sbr.rel (0) target = $region17
    $region16: #{tpu_custom_call.1} parent=1 // pred_region
      %43 = dma.done [#allocation6], 512
    $region17: #{tpu_custom_call.1} parent=1 // pred_fallthru
      _
    %v44 = vld [vmem:[#allocation2] sm:$0xff]
    %v45 = vld [vmem:[#allocation2 + $0x8] sm:$0xff]
    %v46 = vld [vmem:[#allocation5] sm:$0xff]
    %v47 = vld [vmem:[#allocation5 + $0x8] sm:$0xff]
    %v48 = vld [vmem:[#allocation5 + $0x10] sm:$0xff]
    %v49 = vld [vmem:[#allocation5 + $0x18] sm:$0xff]
    %vm50 = vcmask 261120
    %v52 = vsel %vm50, %v44, 0
    %v55 = vsel %vm50, %v45, 0
    %57 = vmatpush.msra.mxu0 0.0
    %58 = vmatpush.msra.mxu0 0.0
    %59 = vmatpush.msra.mxu0 0.0
    %60 = vmatpush.msra.mxu0 0.0
    %61 = vmatpush.msra.mxu0 0.0
    %62 = vmatpush.msra.mxu0 0.0
    %63 = vmatpush.msra.mxu0 0.0
    %64 = vmatpush.msra.mxu0 0.0
    %65 = vmatpush.msra.mxu0 0.0
    %66 = vmatpush.msra.mxu0 0.0
    %67 = vmatpush.msra.mxu0 0.0
    %68 = vmatpush.msra.mxu0 0.0
    %69 = vmatpush.msra.mxu0 %v49
    %70 = vmatpush.msra.mxu0 %v48
    %71 = vmatpush.msra.mxu0 %v47
    %72 = vmatpush.msra.mxu0 %v46
    %73 = vmatmul.f32.gmra.mxu0 %v52
    %v74 = vpop.f32.mrf.mxu0
    %v75 = vadd.f32 0.0, %v74
    %76 = vmatmul.f32.gmra.mxu0 %v55
    %v77 = vpop.f32.mrf.mxu0
    %v78 = vadd.f32 0.0, %v77
    %79 = vdwg.mxu0
    %80 = vst [vmem:[#allocation7] sm:$0xff] %v75
    %81 = vst [vmem:[#allocation7 + $0x8] sm:$0xff] %v78
    // Predicated region
    $region18: #{tpu_custom_call.1} parent=1 // pred_check
      _
    $region19: #{tpu_custom_call.1} parent=1 // pred_check_branch
      %83 = sbr.rel (0) target = $region21
    $region20: #{tpu_custom_call.1} parent=1 // pred_region
      %85 = vsyncadd [#allocation4], 0
      %s86 = sshll.u32 [#allocation7], 4
      %s87 = int_to_ptr.vmem [resolvable:$true] %s86
      %s88 = sshll.u32 %s2, 4
      %s89 = int_to_ptr.hbm [resolvable:$true] %s88
      %94 = dma.vmem_to_hbm [thread:$0]  %s87, 256, %s89, [#allocation4], 128, 128, 8
    $region21: #{tpu_custom_call.1} parent=1 // pred_fallthru
      _
    // Predicated region
    $region22: #{tpu_custom_call.1} parent=1 // pred_check
      _
    $region23: #{tpu_custom_call.1} parent=1 // pred_check_branch
      %96 = sbr.rel (0) target = $region25
    $region24: #{tpu_custom_call.1} parent=1 // pred_region
      %98 = dma.done [#allocation4], 256
    $region25: #{tpu_custom_call.1} parent=1 // pred_fallthru
      _
    %99 = vsyncpa [#allocation3], 1
    %100 = vsyncpa [#allocation6], 1
    %101 = vsyncpa [#allocation4], 1

</llo_original>
